<compile_context>
chip_gen: v7x
topology: tpu7x:2x2x1
jax: 0.10.0
libtpu: 0.0.40
codegen_flags: <defaults>
</compile_context>

<pallas_src>
import functools

import jax
import jax.numpy as jnp
from jax.experimental import pallas as pl
from jax.experimental.pallas import tpu as pltpu

EPS = 1e-12


def prefetch_attn_kernel(x_ref, w_ref, b_ref, norm_ref, amap_ref, acc_ref, *,
                         inv_hw):
    # x_ref    : (B_N, C, T_HW)        spatial tile of B_N batch elements
    # w_ref    : (1, C)                1x1-conv (channel-mixing) weight, VMEM
    # b_ref    : (1, 1)                conv bias, SMEM scalar
    # norm_ref : (B_N, C) or (B_N,1,C) L2-normalized pooled descriptor (epilogue)
    # amap_ref : (B_N, T_HW) or (B_N,1,T_HW) spatial attention map tile
    # acc_ref  : (B_N, C) f32          running spatial sum of x * amap
    hwi = pl.program_id(1)

    @pl.when(hwi == 0)
    def _init():
        acc_ref[...] = jnp.zeros_like(acc_ref)

    x = x_ref[...].astype(jnp.float32)          # (B_N, C, T_HW)
    w = w_ref[...].astype(jnp.float32)          # (1, C)
    bias = b_ref[0, 0]                          # scalar from SMEM

    # --- attention: 1x1 conv over channels (sublane reduce) + sigmoid ---
    logits = jnp.sum(x * w[:, :, None], axis=1) + bias   # (B_N, T_HW)
    amap = jax.nn.sigmoid(logits)                         # (B_N, T_HW)
    if len(amap_ref.shape) == 3:
        amap_ref[...] = amap[:, None, :].astype(amap_ref.dtype)
    else:
        amap_ref[...] = amap.astype(amap_ref.dtype)

    # --- attention_out = x * amap; accumulate spatial sum for the avg pool ---
    att = x * amap[:, None, :]                            # (B_N, C, T_HW)
    # Tree-reduce 128-lane chunks with VPU adds before the final cross-lane
    # (XLU) reduce: keeps XLU issue to ~one reduce per (C) slab per step.
    red = att
    length = att.shape[-1]
    while length > 128 and (length // 128) % 2 == 0:
        half = length // 2
        red = red[..., :half] + red[..., half:]
        length = half
    acc_ref[...] += jnp.sum(red, axis=-1)                 # (B_N, C)

    # --- finalize: mean over HW, then L2N over channels (epilogue only) ---
    @pl.when(hwi == pl.num_programs(1) - 1)
    def _finalize():
        pooled = acc_ref[...] * inv_hw                    # (B_N, C)
        l2 = jnp.sqrt(jnp.sum(pooled * pooled, axis=-1, keepdims=True)) + EPS
        out = pooled / l2
        if len(norm_ref.shape) == 3:
            norm_ref[...] = out[:, None, :].astype(norm_ref.dtype)
        else:
            norm_ref[...] = out.astype(norm_ref.dtype)


def _largest_divisor(n, cap, multiple):
    """Largest d <= cap with d % multiple == 0 and n % d == 0; 0 if none."""
    d = (min(n, cap) // multiple) * multiple
    while d >= multiple:
        if n % d == 0:
            return d
        d -= multiple
    return 0


def _block_bytes(shape, itemsize):
    """Rough VMEM footprint of one block, padding the last two dims to (8,128)."""
    s = list(shape)
    s[-1] = -(-s[-1] // 128) * 128
    if len(s) >= 2:
        s[-2] = -(-s[-2] // 8) * 8
    n = 1
    for d in s:
        n *= d
    return n * itemsize


def prefetch_attn(x, w, b):
    """x: (N, C, H, W) (any float dtype), w: (1, C), b: (1, 1).

    Returns (norm_out (N, C, 1, 1), attention_map (N, 1, H, W)) matching the
    PyTorch module's (pool+L2N output, attention_map) tuple."""
    N, C, H, W = x.shape
    HW = H * W
    HW_pad = -(-HW // 128) * 128
    itemsize = jnp.dtype(x.dtype).itemsize

    x3 = x.reshape(N, C, HW)                     # stream in native dtype
    if HW_pad != HW:
        # Zero padding keeps the pooled sum exact (x==0 -> att==0); padded
        # amap lanes are sliced away below.
        x3 = jnp.pad(x3, ((0, 0), (0, 0), (0, HW_pad - HW)))

    # Spatial tile: lane-aligned, ~<=6 MiB of x per batch element per step.
    spatial_cap = max(128, (6 * 1024 * 1024) // max(1, C * itemsize))
    t_hw = _largest_divisor(HW_pad, spatial_cap, 128) or 128

    # Batch tile: amortize per-step overhead (x block <= ~12 MiB), but keep
    # >= 2 batch blocks so the "parallel" axis shards across v7x's 2 TCs.
    per_elem_bytes = C * t_hw * itemsize
    cap_elems = max(1, (12 * 1024 * 1024) // max(1, per_elem_bytes))
    cap_elems = min(cap_elems, N)
    if N >= 2:
        cap_elems = min(cap_elems, N // 2)
    cap_elems = max(cap_elems, 1)
    b_n = _largest_divisor(N, cap_elems, 8)          # sublane-dense preferred
    if not b_n:
        b_n = _largest_divisor(N, cap_elems, 1) or 1
    dense_out = (b_n % 8 == 0) or (b_n == N)

    grid = (N // b_n, HW_pad // t_hw)

    w2 = jnp.asarray(w).reshape(1, C)
    b2 = jnp.asarray(b, dtype=jnp.float32).reshape(1, 1)

    if dense_out:
        norm_shape, norm_block = (N, C), (b_n, C)
        norm_imap = lambda n, s: (n, 0)
        amap_shape, amap_block = (N, HW_pad), (b_n, t_hw)
        amap_imap = lambda n, s: (n, s)
    else:
        norm_shape, norm_block = (N, 1, C), (b_n, 1, C)
        norm_imap = lambda n, s: (n, 0, 0)
        amap_shape, amap_block = (N, 1, HW_pad), (b_n, 1, t_hw)
        amap_imap = lambda n, s: (n, 0, s)

    # VMEM budget derived from actual (double-buffered) block sizes.
    x_blk = _block_bytes((b_n, C, t_hw), itemsize)
    amap_blk = _block_bytes(amap_block, itemsize)
    norm_blk = _block_bytes(norm_block, itemsize)
    w_blk = _block_bytes((1, C), jnp.dtype(w2.dtype).itemsize)
    acc_blk = _block_bytes((b_n, C), 4)
    vmem_needed = 2 * (x_blk + amap_blk + norm_blk + w_blk) + acc_blk
    vmem_limit = int(min(48 * 1024 * 1024,
                         max(16 * 1024 * 1024,
                             vmem_needed * 1.3 + 2 * 1024 * 1024)))

    kernel = functools.partial(prefetch_attn_kernel, inv_hw=1.0 / HW)

    norm_out, amap = pl.pallas_call(
        kernel,
        out_shape=(
            jax.ShapeDtypeStruct(norm_shape, x.dtype),
            jax.ShapeDtypeStruct(amap_shape, x.dtype),
        ),
        grid_spec=pltpu.PrefetchScalarGridSpec(
            num_scalar_prefetch=0,
            grid=grid,
            in_specs=[
                pl.BlockSpec((b_n, C, t_hw), lambda n, s: (n, 0, s)),
                pl.BlockSpec((1, C), lambda n, s: (0, 0)),
                pl.BlockSpec(memory_space=pltpu.MemorySpace.SMEM),
            ],
            out_specs=[
                pl.BlockSpec(norm_block, norm_imap),
                pl.BlockSpec(amap_block, amap_imap),
            ],
            scratch_shapes=[pltpu.VMEM((b_n, C), jnp.float32)],
        ),
        compiler_params=pltpu.CompilerParams(
            dimension_semantics=("parallel", "arbitrary"),
            vmem_limit_bytes=vmem_limit,
        ),
    )(x3, w2, b2)

    norm_out = norm_out.reshape(N, C, 1, 1)
    if dense_out:
        amap = amap[:, :HW].reshape(N, 1, H, W)
    else:
        amap = amap[:, :, :HW].reshape(N, 1, H, W)
    return norm_out, amap


def reference(x, w, b):
    """Plain-JAX reference of the same forward pass (for verification)."""
    xf = x.astype(jnp.float32)
    logits = jnp.einsum('oc,nchw->nohw', w.astype(jnp.float32), xf) \
        + b.reshape(1, 1, 1, 1).astype(jnp.float32)
    amap = jax.nn.sigmoid(logits)
    att_out = xf * amap
    pooled = jnp.mean(att_out, axis=(2, 3), keepdims=True)          # (N, C, 1, 1)
    nrm = jnp.sqrt(jnp.sum(pooled * pooled, axis=1, keepdims=True)) + EPS
    return (pooled / nrm).astype(x.dtype), amap.astype(x.dtype)


if __name__ == "__main__":
    key = jax.random.PRNGKey(0)
    kx, kw, kb = jax.random.split(key, 3)

    N, C, H, W = 2, 4, 16, 16
    x = jax.random.normal(kx, (N, C, H, W), dtype=jnp.float32)

    # deterministic parameter init for the attention 1x1 conv (C -> 1)
    w = jax.random.normal(kw, (1, C), dtype=jnp.float32) * 0.1
    b = jax.random.normal(kb, (1, 1), dtype=jnp.float32) * 0.1

    norm_out, amap = prefetch_attn(x, w, b)
    jax.block_until_ready((norm_out, amap))

    ref_norm, ref_amap = reference(x, w, b)
    assert norm_out.shape == (N, C, 1, 1)
    assert amap.shape == (N, 1, H, W)
    assert jnp.allclose(norm_out, ref_norm, atol=1e-5, rtol=1e-5)
    assert jnp.allclose(amap, ref_amap, atol=1e-5, rtol=1e-5)

    print("KERNEL_OK")
</pallas_src>

<mosaic_0001>
module attributes {stable_mosaic.version = 11 : i64} {
  func.func @prefetch_attn_kernel(%arg0: i32, %arg1: i32, %arg2: memref<1x4x256xf32, #tpu.memory_space<vmem>>, %arg3: memref<1x4xf32, #tpu.memory_space<vmem>>, %arg4: memref<1x1xf32, #tpu.memory_space<smem>>, %arg5: memref<1x1x4xf32, #tpu.memory_space<vmem>>, %arg6: memref<1x1x256xf32, #tpu.memory_space<vmem>>, %arg7: memref<1x4xf32, #tpu.memory_space<vmem>>) attributes {dimension_semantics = [#tpu.dimension_semantics<parallel>, #tpu.dimension_semantics<arbitrary>], iteration_bounds = array<i64: 2, 1>, scalar_prefetch = 0 : i64, scratch_operands = 1 : i64, tpu.core_type = #tpu.core_type<tc>, window_params = [{transform_indices = @transform_0, window_bounds = array<i64: 1, 4, 256>}, {pipeline_mode = #tpu.pipeline_mode<synchronous>, transform_indices = @transform_1, window_bounds = array<i64: 1, 4>}, {transform_indices = @transform_2, window_bounds = array<i64: 1, 1>}, {transform_indices = @transform_3, window_bounds = array<i64: 1, 1, 4>}, {transform_indices = @transform_4, window_bounds = array<i64: 1, 1, 256>}]} {
    %c0_i32 = arith.constant 0 : i32
    %0 = arith.cmpi eq, %arg1, %c0_i32 : i32
    %1 = arith.extui %0 : i1 to i32
    %c0_i32_0 = arith.constant 0 : i32
    %2 = arith.cmpi ne, %1, %c0_i32_0 : i32
    scf.if %2 {
      %cst_18 = arith.constant 0.000000e+00 : f32
      %32 = vector.broadcast %cst_18 : f32 to vector<1x4xf32>
      %c0_19 = arith.constant 0 : index
      %c0_20 = arith.constant 0 : index
      %33 = vector.load %arg7[%c0_19, %c0_20] : memref<1x4xf32, #tpu.memory_space<vmem>>, vector<1x4xf32>
      tpu.vector_store %arg7[%c0_19, %c0_20], %32 {strides = array<i32>} : memref<1x4xf32, #tpu.memory_space<vmem>>, vector<1x4xf32>,
    } else {
    }
    %c0 = arith.constant 0 : index
    %c0_1 = arith.constant 0 : index
    %c0_2 = arith.constant 0 : index
    %3 = vector.load %arg2[%c0, %c0_1, %c0_2] : memref<1x4x256xf32, #tpu.memory_space<vmem>>, vector<1x4x256xf32>
    %c0_3 = arith.constant 0 : index
    %c0_4 = arith.constant 0 : index
    %4 = vector.load %arg3[%c0_3, %c0_4] : memref<1x4xf32, #tpu.memory_space<vmem>>, vector<1x4xf32>
    %c0_5 = arith.constant 0 : index
    %c0_6 = arith.constant 0 : index
    %5 = memref.load %arg4[%c0_5, %c0_6] : memref<1x1xf32, #tpu.memory_space<smem>>
    %6 = vector.shape_cast %4 : vector<1x4xf32> to vector<1x4x1xf32>
    %7 = vector.broadcast %6 : vector<1x4x1xf32> to vector<1x4x256xf32>
    %8 = arith.mulf %3, %7 : vector<1x4x256xf32>
    %cst = arith.constant dense<0.000000e+00> : vector<1x256xf32>
    %9 = vector.multi_reduction <add>, %8, %cst [1] : vector<1x4x256xf32> to vector<1x256xf32>
    %10 = vector.broadcast %5 : f32 to vector<1x256xf32>
    %11 = arith.addf %9, %10 : vector<1x256xf32>
    %12 = arith.negf %11 : vector<1x256xf32>
    %13 = math.exp %12 : vector<1x256xf32>
    %cst_7 = arith.constant 1.000000e+00 : f32
    %14 = vector.broadcast %cst_7 : f32 to vector<1x256xf32>
    %15 = arith.addf %14, %13 : vector<1x256xf32>
    %16 = arith.divf %14, %15 : vector<1x256xf32>
    %17 = vector.shape_cast %16 : vector<1x256xf32> to vector<1x1x256xf32>
    %c0_8 = arith.constant 0 : index
    %c0_9 = arith.constant 0 : index
    %c0_10 = arith.constant 0 : index
    %18 = vector.load %arg6[%c0_8, %c0_9, %c0_10] : memref<1x1x256xf32, #tpu.memory_space<vmem>>, vector<1x1x256xf32>
    tpu.vector_store %arg6[%c0_8, %c0_9, %c0_10], %17 {strides = array<i32>} : memref<1x1x256xf32, #tpu.memory_space<vmem>>, vector<1x1x256xf32>,
    %19 = vector.shape_cast %16 : vector<1x256xf32> to vector<1x1x256xf32>
    %20 = vector.broadcast %19 : vector<1x1x256xf32> to vector<1x4x256xf32>
    %21 = arith.mulf %3, %20 : vector<1x4x256xf32>
    %22 = vector.extract_strided_slice %21 {offsets = [0, 0, 0], sizes = [1, 4, 128], strides = [1, 1, 1]} : vector<1x4x256xf32> to vector<1x4x128xf32>
    %23 = vector.extract_strided_slice %21 {offsets = [0, 0, 128], sizes = [1, 4, 128], strides = [1, 1, 1]} : vector<1x4x256xf32> to vector<1x4x128xf32>
    %24 = arith.addf %22, %23 : vector<1x4x128xf32>
    %c0_11 = arith.constant 0 : index
    %c0_12 = arith.constant 0 : index
    %25 = vector.load %arg7[%c0_11, %c0_12] : memref<1x4xf32, #tpu.memory_space<vmem>>, vector<1x4xf32>
    %cst_13 = arith.constant dense<0.000000e+00> : vector<1x4xf32>
    %26 = vector.multi_reduction <add>, %24, %cst_13 [2] : vector<1x4x128xf32> to vector<1x4xf32>
    %27 = arith.addf %25, %26 : vector<1x4xf32>
    %c0_14 = arith.constant 0 : index
    %c0_15 = arith.constant 0 : index
    %28 = vector.load %arg7[%c0_14, %c0_15] : memref<1x4xf32, #tpu.memory_space<vmem>>, vector<1x4xf32>
    tpu.vector_store %arg7[%c0_14, %c0_15], %27 {strides = array<i32>} : memref<1x4xf32, #tpu.memory_space<vmem>>, vector<1x4xf32>,
    %c0_i32_16 = arith.constant 0 : i32
    %29 = arith.cmpi eq, %arg1, %c0_i32_16 : i32
    %30 = arith.extui %29 : i1 to i32
    %c0_i32_17 = arith.constant 0 : i32
    %31 = arith.cmpi ne, %30, %c0_i32_17 : i32
    scf.if %31 {
      %c0_18 = arith.constant 0 : index
      %c0_19 = arith.constant 0 : index
      %32 = vector.load %arg7[%c0_18, %c0_19] : memref<1x4xf32, #tpu.memory_space<vmem>>, vector<1x4xf32>
      %cst_20 = arith.constant 3.906250e-03 : f32
      %33 = vector.broadcast %cst_20 : f32 to vector<1x4xf32>
      %34 = arith.mulf %32, %33 : vector<1x4xf32>
      %35 = arith.mulf %34, %34 : vector<1x4xf32>
      %cst_21 = arith.constant dense<0.000000e+00> : vector<1xf32>
      %36 = vector.multi_reduction <add>, %35, %cst_21 [1] : vector<1x4xf32> to vector<1xf32>
      %37 = vector.shape_cast %36 : vector<1xf32> to vector<1x1xf32>
      %38 = math.sqrt %37 : vector<1x1xf32>
      %cst_22 = arith.constant 9.99999996E-13 : f32
      %39 = vector.broadcast %cst_22 : f32 to vector<1x1xf32>
      %40 = arith.addf %38, %39 : vector<1x1xf32>
      %41 = vector.broadcast %40 : vector<1x1xf32> to vector<1x4xf32>
      %42 = arith.divf %34, %41 : vector<1x4xf32>
      %43 = vector.shape_cast %42 : vector<1x4xf32> to vector<1x1x4xf32>
      %c0_23 = arith.constant 0 : index
      %c0_24 = arith.constant 0 : index
      %c0_25 = arith.constant 0 : index
      %44 = vector.load %arg5[%c0_23, %c0_24, %c0_25] : memref<1x1x4xf32, #tpu.memory_space<vmem>>, vector<1x1x4xf32>
      tpu.vector_store %arg5[%c0_23, %c0_24, %c0_25], %43 {strides = array<i32>} : memref<1x1x4xf32, #tpu.memory_space<vmem>>, vector<1x1x4xf32>,
    } else {
    }
    return
  }
  func.func @transform_0(%arg0: i32, %arg1: i32) -> (i32, i32, i32) {
    %c0_i32 = arith.constant 0 : i32
    %c0_i32_0 = arith.constant 0 : i32
    return %arg0, %c0_i32, %arg1 : i32, i32, i32
  }
  func.func @transform_1(%arg0: i32, %arg1: i32) -> (i32, i32) {
    %c0_i32 = arith.constant 0 : i32
    %c0_i32_0 = arith.constant 0 : i32
    %c0_i32_1 = arith.constant 0 : i32
    return %c0_i32, %c0_i32_0 : i32, i32
  }
  func.func @transform_2(%arg0: i32, %arg1: i32) -> (i32, i32) {
    %c0_i32 = arith.constant 0 : i32
    %c0_i32_0 = arith.constant 0 : i32
    %c0_i32_1 = arith.constant 0 : i32
    return %c0_i32, %c0_i32_0 : i32, i32
  }
  func.func @transform_3(%arg0: i32, %arg1: i32) -> (i32, i32, i32) {
    %c0_i32 = arith.constant 0 : i32
    %c0_i32_0 = arith.constant 0 : i32
    %c0_i32_1 = arith.constant 0 : i32
    return %arg0, %c0_i32, %c0_i32_0 : i32, i32, i32
  }
  func.func @transform_4(%arg0: i32, %arg1: i32) -> (i32, i32, i32) {
    %c0_i32 = arith.constant 0 : i32
    %c0_i32_0 = arith.constant 0 : i32
    return %arg0, %c0_i32, %arg1 : i32, i32, i32
  }
}

</mosaic_0001>

<llo_original>
// kernel: tpu_custom_call.1
$region0: #{tpu_custom_call.1}
  #allocation0 [shape = 'u32[]', space=smem, size = 0x4, offset = 0x4, fixed_abs, tag = 'smem constant byte address 0x4 - core index']
  #allocation1 [shape = 'u32[144,128]{1,0:T(1,128)}', space=vmem, size = 0x12000, scoped, tag = 'internal scratch']
  #allocation2 [shape = 'f32[1,4]{1,0:T(1,128)}', space=vmem, size = 0x200, scoped, tag = 'scratch operand']
  #allocation3 [shape = 'f32[1,1]{1,0:T(1,128)S(6)}', space=smem, size = 0x200, scoped, tag = 'scoped memory for tpu_custom_call.1']
  %s0 = inlined_call_operand.hbm [shape: f32[2,4,256], index: 0, kind: input, shape index: {}]
  %s1 = inlined_call_operand.vmem [shape: f32[1,4], index: 1, kind: input, shape index: {}]
  %s2 = inlined_call_operand.<no memory space> [shape: f32[1,1], index: 2, kind: input, shape index: {}]
  %s3 = inlined_call_operand.hbm [shape: f32[2,1,4], index: 3, kind: output, shape index: {0}]
  %s4 = inlined_call_operand.hbm [shape: f32[2,1,256], index: 4, kind: output, shape index: {1}]
  %5 = xla_tuple %s3, %s4
  %s6 = sld [smem:[#allocation0]]
  $region65: #{tpu_custom_call.1} parent=0
    _
  %s8 = ssub.s32 1, %s6
  %s9 = scalar_select 0, %s8, %s6
  %10 = sst [smem:[#allocation3]] %s2
  $region1: #{tpu_custom_call.1} parent=0
    #allocation4 [shape = 'u8[8192]{0}', space=vmem, size = 0x2000, scoped, tag = 'input window, operand 0']
    #allocation5 [shape = 's32[2]{0}', space=sflag, size = 0x8, scoped, tag = 'scoped memory for tpu_custom_call.1']
    #allocation6 [shape = 's32[2]{0}', space=sflag, size = 0x8, scoped, tag = 'scoped memory for tpu_custom_call.1']
    #allocation7 [shape = 'u8[1024]{0}', space=vmem, size = 0x400, scoped, tag = 'output window, operand 0']
    #allocation8 [shape = 'u8[2048]{0}', space=vmem, size = 0x800, scoped, tag = 'output window, operand 1']
    #allocation9 [shape = 's32[2]{0}', space=sflag, size = 0x8, scoped, tag = 'scoped memory for tpu_custom_call.1']
    %11 = vsyncpa [#allocation5], 0
    %s12 = scalar_lea.sflag [#allocation5], 1
    %13 = vsyncpa %s12, 0
    %14 = vsyncpa [#allocation6], 0
    %s15 = scalar_lea.sflag [#allocation6], 1
    %16 = vsyncpa %s15, 0
    %17 = vsyncpa [#allocation9], 0
    %s18 = scalar_lea.sflag [#allocation9], 1
    %19 = vsyncpa %s18, 0
    loop: start=0, step=1, limit=4
    $region2: #{tpu_custom_call.1} parent=1 // loop_pre_header
      _
    $region3: #{tpu_custom_call.1} parent=1 // loop_header
      %s21 = sphi 0, %s25
      %p22 = scmp.ge.s32.totalorder %s21, 4
      %s28 = sphi 0, %s40
      %s29 = sphi 0, %s36
      %s30 = sphi 0, %s28
      %s31 = sphi 0, %s29
      %s32 = sphi 0, %s30
      %s33 = sphi 0, %s31
      %s45 = sphi 0, %s47
      %s48 = sphi 0, %s45
      %s49 = sphi 0, %s48
      %s65 = sphi 0, %s49
      %s69 = sphi 0, %s69
      %s71 = sphi 0, %s69
      %s72 = sphi 0, %s71
      %s86 = sphi 0, %s72
      %s90 = sphi 0, %s90
      %s92 = sphi 0, %s90
      %s93 = sphi 0, %s92
      %s107 = sphi 0, %s93
      %s113 = sphi 0, %s115
      %s116 = sphi 0, %s113
      %s117 = sphi 0, %s116
      %s133 = sphi 0, %s117
      %s141 = sphi 0, %s143
      %s144 = sphi 0, %s141
      %s145 = sphi 0, %s144
      %s161 = sphi 0, %s145
    $region4: #{tpu_custom_call.1} parent=1 // loop_header_branch
      %24 = sbr.rel (%p22) target = $region8
    $region5: #{tpu_custom_call.1} parent=1 // loop_body
      %s26 = ssub.s32 %s21, 1
      %s27 = ssub.s32 %s21, 2
      %s34 = sadd.s32 1, %s29
      %p35 = scmp.ge.s32.totalorder %s34, 1
      %s36 = scalar_select %p35, 0, %s34
      %s37 = sadd.s32 1, %s28
      %s38 = scalar_select %p35, %s37, %s28
      %p39 = scmp.ge.s32.totalorder %s38, 2
      %s40 = scalar_select %p39, 0, %s38
      %s41 = ssub.s32 %s28, %s40
      %s42 = ssub.s32 %s29, %s36
      %s43 = sor.u32 %s41, %s42
      %p44 = scmp.eq.s32.totalorder %s43, 0
      %s46 = sadd.s32 %s45, 1
      %s47 = scalar_select %p44, %s45, %s46
      %p50 = pneg %p44
      %p51 = scmp.eq.s32.totalorder %s21, 1
      %p52 = por %p50, %p51
      %p53 = scmp.ne.s32.totalorder %s45, %s48
      %p54 = scmp.eq.s32.totalorder %s21, 0
      %p55 = por %p53, %p54
      %p56 = scmp.ne.s32.totalorder %s45, %s48
      %p57 = scmp.eq.s32.totalorder %s26, 1
      %p58 = por %p56, %p57
      %p59 = scmp.ne.s32.totalorder %s48, %s49
      %p60 = scmp.eq.s32.totalorder %s26, 0
      %p61 = por %p59, %p60
      %p62 = scmp.ne.s32.totalorder %s48, %s49
      %p63 = scmp.eq.s32.totalorder %s27, 1
      %p64 = por %p62, %p63
      %p66 = scmp.ne.s32.totalorder %s49, %s65
      %p67 = scmp.eq.s32.totalorder %s27, 0
      %p68 = por %p66, %p67
      %s70 = sadd.s32 %s69, 1
      %p73 = scmp.eq.s32.totalorder %s21, 1
      %p74 = scmp.ne.s32.totalorder %s69, %s71
      %p75 = scmp.eq.s32.totalorder %s21, 0
      %p76 = por %p74, %p75
      %p77 = scmp.ne.s32.totalorder %s69, %s71
      %p78 = scmp.eq.s32.totalorder %s26, 1
      %p79 = por %p77, %p78
      %p80 = scmp.ne.s32.totalorder %s71, %s72
      %p81 = scmp.eq.s32.totalorder %s26, 0
      %p82 = por %p80, %p81
      %p83 = scmp.ne.s32.totalorder %s71, %s72
      %p84 = scmp.eq.s32.totalorder %s27, 1
      %p85 = por %p83, %p84
      %p87 = scmp.ne.s32.totalorder %s72, %s86
      %p88 = scmp.eq.s32.totalorder %s27, 0
      %p89 = por %p87, %p88
      %s91 = sadd.s32 %s90, 1
      %p94 = scmp.eq.s32.totalorder %s21, 1
      %p95 = scmp.ne.s32.totalorder %s90, %s92
      %p96 = scmp.eq.s32.totalorder %s21, 0
      %p97 = por %p95, %p96
      %p98 = scmp.ne.s32.totalorder %s90, %s92
      %p99 = scmp.eq.s32.totalorder %s26, 1
      %p100 = por %p98, %p99
      %p101 = scmp.ne.s32.totalorder %s92, %s93
      %p102 = scmp.eq.s32.totalorder %s26, 0
      %p103 = por %p101, %p102
      %p104 = scmp.ne.s32.totalorder %s92, %s93
      %p105 = scmp.eq.s32.totalorder %s27, 1
      %p106 = por %p104, %p105
      %p108 = scmp.ne.s32.totalorder %s93, %s107
      %p109 = scmp.eq.s32.totalorder %s27, 0
      %p110 = por %p108, %p109
      %s111 = ssub.s32 %s28, %s40
      %p112 = scmp.eq.s32.totalorder %s111, 0
      %s114 = sadd.s32 %s113, 1
      %s115 = scalar_select %p112, %s113, %s114
      %p118 = pneg %p112
      %p119 = scmp.eq.s32.totalorder %s21, 1
      %p120 = por %p118, %p119
      %p121 = scmp.ne.s32.totalorder %s113, %s116
      %p122 = scmp.eq.s32.totalorder %s21, 0
      %p123 = por %p121, %p122
      %p124 = scmp.ne.s32.totalorder %s113, %s116
      %p125 = scmp.eq.s32.totalorder %s26, 1
      %p126 = por %p124, %p125
      %p127 = scmp.ne.s32.totalorder %s116, %s117
      %p128 = scmp.eq.s32.totalorder %s26, 0
      %p129 = por %p127, %p128
      %p130 = scmp.ne.s32.totalorder %s116, %s117
      %p131 = scmp.eq.s32.totalorder %s27, 1
      %p132 = por %p130, %p131
      %p134 = scmp.ne.s32.totalorder %s117, %s133
      %p135 = scmp.eq.s32.totalorder %s27, 0
      %p136 = por %p134, %p135
      %s137 = ssub.s32 %s28, %s40
      %s138 = ssub.s32 %s29, %s36
      %s139 = sor.u32 %s137, %s138
      %p140 = scmp.eq.s32.totalorder %s139, 0
      %s142 = sadd.s32 %s141, 1
      %s143 = scalar_select %p140, %s141, %s142
      %p146 = pneg %p140
      %p147 = scmp.eq.s32.totalorder %s21, 1
      %p148 = por %p146, %p147
      %p149 = scmp.ne.s32.totalorder %s141, %s144
      %p150 = scmp.eq.s32.totalorder %s21, 0
      %p151 = por %p149, %p150
      %p152 = scmp.ne.s32.totalorder %s141, %s144
      %p153 = scmp.eq.s32.totalorder %s26, 1
      %p154 = por %p152, %p153
      %p155 = scmp.ne.s32.totalorder %s144, %s145
      %p156 = scmp.eq.s32.totalorder %s26, 0
      %p157 = por %p155, %p156
      %p158 = scmp.ne.s32.totalorder %s144, %s145
      %p159 = scmp.eq.s32.totalorder %s27, 1
      %p160 = por %p158, %p159
      %p162 = scmp.ne.s32.totalorder %s145, %s161
      %p163 = scmp.eq.s32.totalorder %s27, 0
      %p164 = por %p162, %p163
      %p165 = scmp.le.s32.totalorder 1, %s21
      %p166 = scmp.lt.s32.totalorder %s21, 3
      %p167 = pnand %p165, %p166
      %p168 = pneg %p167
      // Predicated region
      $region9: #{tpu_custom_call.1} parent=5 // pred_check
        _
      $region10: #{tpu_custom_call.1} parent=5 // pred_check_branch
        %170 = sbr.rel (%p167) target = $region12
      $region11: #{tpu_custom_call.1} parent=5 // pred_region
        %s171 = ssub.s32 %s21, 1
        // Predicated region
        $region13: #{tpu_custom_call.1} parent=11 // pred_check
          %p172 = pneg %p82
        $region14: #{tpu_custom_call.1} parent=11 // pred_check_branch
          %174 = sbr.rel (%p172) target = $region16
        $region15: #{tpu_custom_call.1} parent=11 // pred_region
          _
        $region16: #{tpu_custom_call.1} parent=11 // pred_fallthru
          _
        // Predicated region
        $region17: #{tpu_custom_call.1} parent=11 // pred_check
          %p175 = pneg %p103
        $region18: #{tpu_custom_call.1} parent=11 // pred_check_branch
          %177 = sbr.rel (%p175) target = $region20
        $region19: #{tpu_custom_call.1} parent=11 // pred_region
          _
        $region20: #{tpu_custom_call.1} parent=11 // pred_fallthru
          _
      $region12: #{tpu_custom_call.1} parent=5 // pred_fallthru
        _
      %p178 = scmp.lt.s32.totalorder %s21, 2
      // Predicated region
      $region21: #{tpu_custom_call.1} parent=5 // pred_check
        %p179 = pneg %p178
      $region22: #{tpu_custom_call.1} parent=5 // pred_check_branch
        %181 = sbr.rel (%p179) target = $region24
      $region23: #{tpu_custom_call.1} parent=5 // pred_region
        // Predicated region
        $region25: #{tpu_custom_call.1} parent=23 // pred_check
          %p182 = pneg %p55
        $region26: #{tpu_custom_call.1} parent=23 // pred_check_branch
          %184 = sbr.rel (%p182) target = $region28
        $region27: #{tpu_custom_call.1} parent=23 // pred_region
          %s185 = sand.u32 %s45, 1
          %s186 = scalar_lea.sflag [#allocation5], %s185
          %s187 = sand.u32 %s45, 1
          %s188 = smul.addr %s187, 8
          %s189 = scalar_lea.vmem [#allocation4], %s188
          %s190 = smul.u32 2, %s29
          %s192 = ssub.s32 128, 128
          %193 = vsyncadd %s186, %s192
          %s194 = smul.addr %s28, 2
          %s195 = sadd.s32 %s190, %s194
          %s196 = smul.addr %s195, 64
          %s197 = scalar_lea.hbm %s0, %s196
          %s199 = sshll.u32 %s189, 4
          %s200 = int_to_ptr.vmem [resolvable:$true] %s199
          %202 = dma.hbm_to_vmem [thread:$0]  %s197, 128, %s200, %s186
        $region28: #{tpu_custom_call.1} parent=23 // pred_fallthru
          _
      $region24: #{tpu_custom_call.1} parent=5 // pred_fallthru
        _
      %p203 = scmp.le.s32.totalorder 1, %s21
      %p204 = scmp.lt.s32.totalorder %s21, 3
      %p205 = pnand %p203, %p204
      %p206 = pneg %p205
      // Predicated region
      $region29: #{tpu_custom_call.1} parent=5 // pred_check
        _
      $region30: #{tpu_custom_call.1} parent=5 // pred_check_branch
        %208 = sbr.rel (%p205) target = $region32
      $region31: #{tpu_custom_call.1} parent=5 // pred_region
        %s209 = ssub.s32 %s21, 1
        %s210 = sand.u32 %s48, 1
        %s211 = scalar_lea.sflag [#allocation5], %s210
        %s212 = sand.u32 %s48, 1
        %s213 = smul.addr %s212, 8
        %s214 = scalar_lea.vmem [#allocation4], %s213
        // Predicated region
        $region33: #{tpu_custom_call.1} parent=31 // pred_check
          %p215 = pneg %p61
        $region34: #{tpu_custom_call.1} parent=31 // pred_check_branch
          %217 = sbr.rel (%p215) target = $region36
        $region35: #{tpu_custom_call.1} parent=31 // pred_region
          %218 = dma.done %s211, 128
        $region36: #{tpu_custom_call.1} parent=31 // pred_fallthru
          _
        %s219 = sand.u32 %s48, 1
        %s220 = scalar_lea.sflag [#allocation5], %s219
        %s221 = sand.u32 %s48, 1
        %s222 = smul.addr %s221, 8
        %s223 = scalar_lea.vmem [#allocation4], %s222
        %p224 = pneg %p61
        %p225 = pneg %p58
        %p226 = pneg %p82
        %p227 = pneg %p79
        %p228 = pneg %p103
        %p229 = pneg %p100
        %p230 = pneg %p129
        %p231 = pneg %p126
        %s232 = sand.u32 %s116, 1
        %s233 = scalar_lea.sflag [#allocation6], %s232
        %s234 = sand.u32 %s116, 1
        %s235 = scalar_lea.vmem [#allocation7], %s234
        %p236 = pneg %p157
        %p237 = pneg %p154
        %s238 = sand.u32 %s144, 1
        %s239 = scalar_lea.sflag [#allocation9], %s238
        %s240 = sand.u32 %s144, 1
        %s241 = smul.addr %s240, 2
        %s242 = scalar_lea.vmem [#allocation8], %s241
        %s243 = smul.u32 2, %s31
        %s244 = smul.u32 2, %s31
        %p245 = scmp.eq.s32.totalorder %s31, 0
        // Predicated region
        $region37: #{tpu_custom_call.1} parent=31 // pred_check
          %p246 = pneg %p245
        $region38: #{tpu_custom_call.1} parent=31 // pred_check_branch
          %248 = sbr.rel (%p246) target = $region40
        $region39: #{tpu_custom_call.1} parent=31 // pred_region
          %vm249 = vcmask 24576
          %250 = vst.msk [vmem:[#allocation2] sm:$0x1] %vm249, 0.0
        $region40: #{tpu_custom_call.1} parent=31 // pred_fallthru
          _
        %v251 = vld [vmem:[%s214] sm:$0xff]
        %v252 = vld [vmem:[%s1] sm:$0x1]
        %s253 = sld [smem:[#allocation3]]
        %v254 = vlaneseq
        %v255 = vshrl.u32 %v254, 7
        %v256 = vsub.s32 0, %v255
        %v257 = vrot.slane %v252, %v256
        %259 = vbcast.lane.b32.xlu0 %v257, 256
        %v260 = vpop.permute.xlu0 %259
        %v263 = vunpack.c.l.s4 839922192
        %v264 = vunpack.c.0.s8 %v263
        %v265 = vlaneseq
        %v266 = vshrl.u32 %v265, 7
        %v267 = vsub.s32 %v264, %v266
        %v268 = vrot.slane %v260, %v267
        %v270 = vmul.f32 %v251, %v268
        %v272 = vcombine.high %v270, %v270
        %vm274 = vcmask 1043456
        %v275 = vsel %vm274, %v270, 0.0
        %v276 = vrot.slane %v275, 4
        %v277 = vadd.f32 %v275, %v276
        %v278 = vrot.slane %v277, 2
        %v279 = vadd.f32 %v277, %v278
        %v280 = vrot.slane %v279, 1
        %v281 = vadd.f32 %v279, %v280
        %v282 = vsel %vm274, %v272, 0.0
        %v283 = vrot.slane %v282, 4
        %v284 = vadd.f32 %v282, %v283
        %v285 = vrot.slane %v284, 2
        %v286 = vadd.f32 %v284, %v285
        %v287 = vrot.slane %v286, 1
        %v288 = vadd.f32 %v286, %v287
        %v289 = vstv %s253
        %v290 = vadd.f32 %v281, %v289
        %v291 = vadd.f32 %v288, %v289
        %v292 = vxor.u32 %v290, 2147483648
        %v293 = vxor.u32 %v291, 2147483648
        %v294 = vmul.f32 %v292, 1.442695
        %v295 = vpow.pop %v294
        %v296 = vmul.f32 %v293, 1.442695
        %v297 = vpow.pop %v296
        %v298 = vadd.f32 %v295, 1.0
        %v299 = vadd.f32 %v297, 1.0
        %v300 = vrcp.pop %v298
        %v301 = vmul.f32 1.0, %v300
        %v302 = vrcp.pop %v299
        %v303 = vmul.f32 1.0, %v302
        %v306 = vcombine.low %v301, %v303
        %v308 = vunpack.c.l.s4 1966171168
        %v309 = vunpack.c.0.s8 %v308
        %v310 = vlaneseq
        %v311 = vshrl.u32 %v310, 7
        %v312 = vsub.s32 %v309, %v311
        %v313 = vrot.slane %v306, %v312
        %v315 = vunpack.c.l.s4 1966171168
        %v316 = vunpack.c.0.s8 %v315
        %v317 = vlaneseq
        %v318 = vshrl.u32 %v317, 7
        %v319 = vsub.s32 %v316, %v318
        %v320 = vrot.slane %v313, %v319
        %v322 = vlaneseq
        %vm323 = vcmp.ge.s32.totalorder %v322, 0
        %vm324 = vcmp.lt.s32.totalorder %v322, 256
        %vm325 = vmand %vm323, %vm324
        %326 = vst.msk [vmem:[%s242] sm:$0x3] %vm325, %v320
        %v328 = vmul.f32 %v251, %v306
        %v330 = vrot.slane %v328, 4
        %v332 = vadd.f32 %v328, %v330
        %v333 = vld [vmem:[#allocation2] sm:$0x1]
        %v334 = vsel %vm274, %v332, 0.0
        %335 = vadd.xlane.f32.xlu0 %v334
        %v336 = vpop.xlane.xlu0 %335
        %v338 = vlaneseq
        %v339 = vshrl.u32 %v338, 7
        %v340 = vsub.s32 0, %v339
        %v341 = vrot.slane %v336, %v340
        %v342 = vlaneseq
        %v343 = vshrl.u32 %v342, 7
        %v344 = vsub.s32 1, %v343
        %v345 = vrot.slane %v336, %v344
        %v346 = vlaneseq
        %v347 = vshrl.u32 %v346, 7
        %v348 = vsub.s32 2, %v347
        %v349 = vrot.slane %v336, %v348
        %v350 = vlaneseq
        %v351 = vshrl.u32 %v350, 7
        %v352 = vsub.s32 3, %v351
        %v353 = vrot.slane %v336, %v352
        %v354 = vcombine.low %v341, %v345
        %v355 = vcombine.low %v349, %v353
        %v357 = vunpack.c.l.s4 1966171168
        %v358 = vunpack.c.0.s8 %v357
        %v359 = vlaneseq
        %v360 = vshrl.u32 %v359, 7
        %v361 = vsub.s32 %v358, %v360
        %v362 = vrot.slane %v354, %v361
        %v364 = vunpack.c.l.s4 1966171168
        %v365 = vunpack.c.0.s8 %v364
        %v366 = vlaneseq
        %v367 = vshrl.u32 %v366, 7
        %v368 = vsub.s32 %v365, %v367
        %v369 = vrot.slane %v355, %v368
        %v370 = vcombine.low %v362, %v369
        %v372 = vunpack.c.l.s4 1966171168
        %v373 = vunpack.c.0.s8 %v372
        %v374 = vlaneseq
        %v375 = vshrl.u32 %v374, 7
        %v376 = vsub.s32 %v373, %v375
        %v377 = vrot.slane %v370, %v376
        %378 = vset.pattern.permute.xlu0 0
        %379 = vperm.xlu0 %378, %v377
        %v380 = vpop.permute.xlu0 %379
        %v381 = vlaneseq
        %v382 = vand.u32 %v381, 127
        %v383 = vlaneseq
        %v384 = vshrl.u32 %v383, 7
        %v385 = vsub.s32 %v382, %v384
        %v386 = vrot.slane %v380, %v385
        %v388 = vunpack.c.l.s4 1966171168
        %v389 = vunpack.c.0.s8 %v388
        %v390 = vlaneseq
        %v391 = vshrl.u32 %v390, 7
        %v392 = vsub.s32 %v389, %v391
        %v393 = vrot.slane %v386, %v392
        %v395 = vunpack.c.l.s4 1966171168
        %v396 = vunpack.c.0.s8 %v395
        %v397 = vlaneseq
        %v398 = vshrl.u32 %v397, 7
        %v399 = vsub.s32 %v396, %v398
        %v400 = vrot.slane %v393, %v399
        %v402 = vadd.f32 %v333, %v400
        %vm403 = vcmask 24576
        %404 = vst.msk [vmem:[#allocation2] sm:$0x1] %vm403, %v402
        // Predicated region
        $region41: #{tpu_custom_call.1} parent=31 // pred_check
          %p405 = pneg %p245
        $region42: #{tpu_custom_call.1} parent=31 // pred_check_branch
          %407 = sbr.rel (%p405) target = $region44
        $region43: #{tpu_custom_call.1} parent=31 // pred_region
          %v408 = vld [vmem:[#allocation2] sm:$0x1]
          %v409 = vmul.f32 %v408, 0.00390625
          %v410 = vmul.f32 %v409, %v409
          %v411 = vsel %vm403, %v410, 0.0
          %412 = vadd.xlane.f32.xlu0 %v411
          %v413 = vpop.xlane.xlu0 %412
          %v414 = vrsqrt.pop %v413
          %v415 = vmul.f32 %v413, %v414
          %vm416 = vcmp.eq.f32.partialorder %v413, inf
          %v417 = vsel %vm416, %v413, %v415
          %vm418 = vcmp.eq.f32.partialorder %v413, 0.0
          %v419 = vand.u32 %v413, 2147483648
          %v420 = vsel %vm418, %v419, %v417
          %v421 = vadd.f32 %v420, 1e-12
          %v422 = vrcp.pop %v421
          %v423 = vmul.f32 %v409, %v422
          %424 = vst.msk [vmem:[%s235] sm:$0x1] %vm403, %v423
        $region44: #{tpu_custom_call.1} parent=31 // pred_fallthru
          _
        %s425 = sand.u32 %s116, 1
        %s426 = scalar_lea.sflag [#allocation6], %s425
        %s427 = sand.u32 %s116, 1
        %s428 = scalar_lea.vmem [#allocation7], %s427
        %s429 = sand.u32 %s144, 1
        %s430 = scalar_lea.sflag [#allocation9], %s429
        %s431 = sand.u32 %s144, 1
        %s432 = smul.addr %s431, 2
        %s433 = scalar_lea.vmem [#allocation8], %s432
        // Predicated region
        $region45: #{tpu_custom_call.1} parent=31 // pred_check
          %p434 = pneg %p126
        $region46: #{tpu_custom_call.1} parent=31 // pred_check_branch
          %436 = sbr.rel (%p434) target = $region48
        $region47: #{tpu_custom_call.1} parent=31 // pred_region
          %s438 = ssub.s32 16, 16
          %439 = vsyncadd %s426, %s438
          %s440 = smul.addr %s30, 16
          %s441 = scalar_lea.hbm %s3, %s440
          %s443 = sshll.u32 %s428, 4
          %s444 = int_to_ptr.vmem [resolvable:$true] %s443
          %446 = dma.vmem_to_hbm [thread:$0]  %s444, 16, %s441, %s426
        $region48: #{tpu_custom_call.1} parent=31 // pred_fallthru
          _
        // Predicated region
        $region49: #{tpu_custom_call.1} parent=31 // pred_check
          %p447 = pneg %p154
        $region50: #{tpu_custom_call.1} parent=31 // pred_check_branch
          %449 = sbr.rel (%p447) target = $region52
        $region51: #{tpu_custom_call.1} parent=31 // pred_region
          %s450 = smul.u32 2, %s31
          %s452 = ssub.s32 32, 32
          %453 = vsyncadd %s430, %s452
          %s454 = smul.addr %s30, 2
          %s455 = sadd.s32 %s450, %s454
          %s456 = smul.addr %s455, 16
          %s457 = scalar_lea.hbm %s4, %s456
          %s459 = sshll.u32 %s433, 4
          %s460 = int_to_ptr.vmem [resolvable:$true] %s459
          %462 = dma.vmem_to_hbm [thread:$0]  %s460, 32, %s457, %s430
        $region52: #{tpu_custom_call.1} parent=31 // pred_fallthru
          _
      $region32: #{tpu_custom_call.1} parent=5 // pred_fallthru
        _
      %p463 = scmp.le.s32.totalorder 2, %s21
      // Predicated region
      $region53: #{tpu_custom_call.1} parent=5 // pred_check
        %p464 = pneg %p463
      $region54: #{tpu_custom_call.1} parent=5 // pred_check_branch
        %466 = sbr.rel (%p464) target = $region56
      $region55: #{tpu_custom_call.1} parent=5 // pred_region
        %s467 = ssub.s32 %s21, 2
        // Predicated region
        $region57: #{tpu_custom_call.1} parent=55 // pred_check
          %p468 = pneg %p132
        $region58: #{tpu_custom_call.1} parent=55 // pred_check_branch
          %470 = sbr.rel (%p468) target = $region60
        $region59: #{tpu_custom_call.1} parent=55 // pred_region
          %s471 = sand.u32 %s117, 1
          %s472 = scalar_lea.sflag [#allocation6], %s471
          %s473 = sand.u32 %s117, 1
          %s474 = scalar_lea.vmem [#allocation7], %s473
          %475 = dma.done %s472, 16
        $region60: #{tpu_custom_call.1} parent=55 // pred_fallthru
          _
        // Predicated region
        $region61: #{tpu_custom_call.1} parent=55 // pred_check
          %p476 = pneg %p160
        $region62: #{tpu_custom_call.1} parent=55 // pred_check_branch
          %478 = sbr.rel (%p476) target = $region64
        $region63: #{tpu_custom_call.1} parent=55 // pred_region
          %s479 = sand.u32 %s145, 1
          %s480 = scalar_lea.sflag [#allocation9], %s479
          %s481 = sand.u32 %s145, 1
          %s482 = smul.addr %s481, 2
          %s483 = scalar_lea.vmem [#allocation8], %s482
          %484 = dma.done %s480, 32
        $region64: #{tpu_custom_call.1} parent=55 // pred_fallthru
          _
      $region56: #{tpu_custom_call.1} parent=5 // pred_fallthru
        _
    $region6: #{tpu_custom_call.1} parent=1 // loop_footer
      %s25 = sadd.s32 1, %s21
    $region7: #{tpu_custom_call.1} parent=1 // loop_footer_branch
      %20 = sbr.rel target = $region3
    $region8: #{tpu_custom_call.1} parent=1 // loop_exit
      _
    %485 = vsyncpa [#allocation5], 1
    %s486 = scalar_lea.sflag [#allocation5], 1
    %487 = vsyncpa %s486, 1
    %488 = vsyncpa [#allocation6], 1
    %s489 = scalar_lea.sflag [#allocation6], 1
    %490 = vsyncpa %s489, 1
    %491 = vsyncpa [#allocation9], 1
    %s492 = scalar_lea.sflag [#allocation9], 1
    %493 = vsyncpa %s492, 1

</llo_original>
